<compile_context>
chip_gen: v7x
topology: tpu7x:2x2x1
jax: 0.10.0
libtpu: 0.0.40
codegen_flags: <defaults>
</compile_context>

<pallas_src>
import functools

import jax
import jax.numpy as jnp
from jax.experimental import pallas as pl
from jax.experimental.pallas import tpu as pltpu


def _round_up(x, m):
    return (x + m - 1) // m * m


def _default_row_tile():
    # v5e MXU is 4x128^2 -> 128-multiples; v6e/v7x are 2x256^2 -> 256-multiples.
    try:
        kind = jax.devices()[0].device_kind.lower()
    except Exception:
        return 256
    return 128 if "v5" in kind else 256


def ffn_layer_kernel(x_ref, w1_ref, b1_ref, w2_ref, b2_ref, g_ref, beta_ref,
                     o_ref, *, d_real, eps):
    # x_ref: (tm, Dp) tile of tokens (padded lanes/rows are zero).
    x = x_ref[...]
    xf = x.astype(jnp.float32)

    # linear1 + ReLU: bf16 x bf16 -> f32 on the MXU.
    h = jnp.dot(x.astype(jnp.bfloat16), w1_ref[...],
                preferred_element_type=jnp.float32)
    h = jnp.maximum(h + b1_ref[...], 0.0)

    # linear2: bf16 x bf16 -> f32 on the MXU.
    y = jnp.dot(h.astype(jnp.bfloat16), w2_ref[...],
                preferred_element_type=jnp.float32)
    y = y + b2_ref[...]

    # residual add in f32 (padded lanes of x and y are exactly zero).
    r = xf + y

    # LayerNorm over the real d_model only (padded lanes masked out of var).
    inv_d = 1.0 / d_real
    mean = jnp.sum(r, axis=-1, keepdims=True) * inv_d
    cen = r - mean
    if d_real != r.shape[-1]:
        lane = jax.lax.broadcasted_iota(jnp.int32, r.shape, 1)
        cen = jnp.where(lane < d_real, cen, 0.0)
    var = jnp.sum(cen * cen, axis=-1, keepdims=True) * inv_d
    rn = cen * jax.lax.rsqrt(var + eps)
    o_ref[...] = (rn * g_ref[...] + beta_ref[...]).astype(o_ref.dtype)


@functools.partial(jax.jit, static_argnames=("row_tile",))
def _ffn_layer_impl(tgt, w1, b1, w2, b2, gamma, beta, *, row_tile):
    L, B, D = tgt.shape
    F = w1.shape[1]
    eps = 1e-5

    n_rows = L * B
    Dp = _round_up(D, 128)          # lane-dense d_model
    Fp = _round_up(F, 128)          # lane-dense dim_feedforward

    # Effective row tile: multiple of 8, no larger than the (padded) row count.
    tm = max(8, _round_up(min(row_tile, n_rows), 8))
    rows_p = _round_up(n_rows, tm)
    grid = (rows_p // tm,)

    # Pad activations with zeros; cast weights to bf16 (MXU-native), keep
    # biases / LayerNorm affine in f32.
    x2d = tgt.reshape(n_rows, D)
    x2d = jnp.pad(x2d, ((0, rows_p - n_rows), (0, Dp - D)))
    w1p = jnp.pad(w1.astype(jnp.bfloat16), ((0, Dp - D), (0, Fp - F)))
    w2p = jnp.pad(w2.astype(jnp.bfloat16), ((0, Fp - F), (0, Dp - D)))
    b1p = jnp.pad(b1.reshape(1, F).astype(jnp.float32), ((0, 0), (0, Fp - F)))
    b2p = jnp.pad(b2.reshape(1, D).astype(jnp.float32), ((0, 0), (0, Dp - D)))
    gp = jnp.pad(gamma.reshape(1, D).astype(jnp.float32), ((0, 0), (0, Dp - D)))
    bp = jnp.pad(beta.reshape(1, D).astype(jnp.float32), ((0, 0), (0, Dp - D)))

    # VMEM budget: double-buffered x/out tiles + weight buffers + f32
    # intermediates (h, r).  Cap below v7x's 64 MiB physical VMEM.
    itemsize = jnp.dtype(tgt.dtype).itemsize
    footprint = (
        2 * tm * Dp * x2d.dtype.itemsize      # x double buffer
        + 2 * tm * Dp * itemsize              # out double buffer
        + 2 * Dp * Fp * 2 + 2 * Fp * Dp * 2   # w1 / w2 (bf16, 2 buffers each)
        + 4 * (Fp + 3 * Dp) * 4               # biases + LN affine
        + tm * Fp * 4 + 2 * tm * Dp * 4       # f32 intermediates
    )
    vmem_limit = int(min(max(2 * footprint, 32 * 1024 * 1024),
                         60 * 1024 * 1024))

    kernel = functools.partial(ffn_layer_kernel, d_real=D, eps=eps)

    out = pl.pallas_call(
        kernel,
        out_shape=jax.ShapeDtypeStruct((rows_p, Dp), tgt.dtype),
        grid=grid,
        in_specs=[
            pl.BlockSpec((tm, Dp), lambda i: (i, 0)),   # x tile
            pl.BlockSpec((Dp, Fp), lambda i: (0, 0)),   # w1 (resident)
            pl.BlockSpec((1, Fp), lambda i: (0, 0)),    # b1
            pl.BlockSpec((Fp, Dp), lambda i: (0, 0)),   # w2 (resident)
            pl.BlockSpec((1, Dp), lambda i: (0, 0)),    # b2
            pl.BlockSpec((1, Dp), lambda i: (0, 0)),    # ln gamma
            pl.BlockSpec((1, Dp), lambda i: (0, 0)),    # ln beta
        ],
        out_specs=pl.BlockSpec((tm, Dp), lambda i: (i, 0)),
        compiler_params=pltpu.CompilerParams(
            dimension_semantics=("parallel",),
            vmem_limit_bytes=vmem_limit),
    )(x2d, w1p, b1p, w2p, b2p, gp, bp)

    return out[:n_rows, :D].reshape(L, B, D)


def ffn_layer(tgt, w1, b1, w2, b2, gamma, beta, row_tile=None):
    if row_tile is None:
        row_tile = _default_row_tile()
    return _ffn_layer_impl(tgt, w1, b1, w2, b2, gamma, beta, row_tile=row_tile)


def xavier_uniform(key, shape, dtype=jnp.float32):
    fan_in, fan_out = shape[0], shape[1]
    limit = (6.0 / (fan_in + fan_out)) ** 0.5
    return jax.random.uniform(key, shape, dtype, minval=-limit, maxval=limit)


if __name__ == "__main__":
    # Small shapes consistent with the module: 8 queries, batch=2,
    # d_model=32, dim_feedforward=64.
    L, B, D, F = 8, 2, 32, 64

    key = jax.random.PRNGKey(0)
    k_x, k_w1, k_b1, k_w2, k_b2 = jax.random.split(key, 5)

    tgt = jax.random.normal(k_x, (L, B, D), dtype=jnp.float32)

    # xavier_uniform for weight matrices (as in _reset_parameters); biases get
    # PyTorch-Linear-style uniform init; LayerNorm affine = (1, 0).
    w1 = xavier_uniform(k_w1, (D, F))                      # linear1.weight.T
    b1 = jax.random.uniform(k_b1, (1, F), minval=-1.0 / D ** 0.5,
                            maxval=1.0 / D ** 0.5)
    w2 = xavier_uniform(k_w2, (F, D))                      # linear2.weight.T
    b2 = jax.random.uniform(k_b2, (1, D), minval=-1.0 / F ** 0.5,
                            maxval=1.0 / F ** 0.5)
    gamma = jnp.ones((1, D), jnp.float32)
    beta = jnp.zeros((1, D), jnp.float32)

    out = ffn_layer(tgt, w1, b1, w2, b2, gamma, beta)
    out = jax.block_until_ready(out)

    # Reference 1: same math as the kernel (bf16 MXU operands, f32 accum/LN).
    bf = jnp.bfloat16
    x2d = tgt.reshape(L * B, D)
    h = jnp.maximum(
        jnp.dot(x2d.astype(bf), w1.astype(bf),
                preferred_element_type=jnp.float32) + b1, 0.0)
    y = jnp.dot(h.astype(bf), w2.astype(bf),
                preferred_element_type=jnp.float32) + b2
    r = x2d + y
    mu = r.mean(-1, keepdims=True)
    var = ((r - mu) ** 2).mean(-1, keepdims=True)
    ref = (((r - mu) * jax.lax.rsqrt(var + 1e-5)) * gamma + beta).reshape(L, B, D)
    assert jnp.allclose(out, ref, atol=5e-3, rtol=5e-3), "mismatch vs bf16 reference"

    # Reference 2: full-f32 PyTorch-equivalent math (loose tol: bf16 matmuls).
    h32 = jnp.maximum(x2d @ w1 + b1, 0.0)
    r32 = x2d + (h32 @ w2 + b2)
    mu32 = r32.mean(-1, keepdims=True)
    v32 = ((r32 - mu32) ** 2).mean(-1, keepdims=True)
    ref32 = (((r32 - mu32) / jnp.sqrt(v32 + 1e-5)) * gamma + beta).reshape(L, B, D)
    assert float(jnp.max(jnp.abs(out - ref32))) < 1e-1, "drifted vs f32 reference"

    print("KERNEL_OK")
</pallas_src>

<mosaic_0001>
module attributes {stable_mosaic.version = 11 : i64} {
  func.func @ffn_layer_kernel(%arg0: i32, %arg1: memref<16x128xf32, #tpu.memory_space<vmem>>, %arg2: memref<128x128xbf16, #tpu.memory_space<vmem>>, %arg3: memref<1x128xf32, #tpu.memory_space<vmem>>, %arg4: memref<128x128xbf16, #tpu.memory_space<vmem>>, %arg5: memref<1x128xf32, #tpu.memory_space<vmem>>, %arg6: memref<1x128xf32, #tpu.memory_space<vmem>>, %arg7: memref<1x128xf32, #tpu.memory_space<vmem>>, %arg8: memref<16x128xf32, #tpu.memory_space<vmem>>) attributes {dimension_semantics = [#tpu.dimension_semantics<parallel>], iteration_bounds = array<i64: 1>, scalar_prefetch = 0 : i64, scratch_operands = 0 : i64, tpu.core_type = #tpu.core_type<tc>, window_params = [{transform_indices = @transform_0, window_bounds = array<i64: 16, 128>}, {pipeline_mode = #tpu.pipeline_mode<synchronous>, transform_indices = @transform_1, window_bounds = array<i64: 128, 128>}, {pipeline_mode = #tpu.pipeline_mode<synchronous>, transform_indices = @transform_2, window_bounds = array<i64: 1, 128>}, {pipeline_mode = #tpu.pipeline_mode<synchronous>, transform_indices = @transform_3, window_bounds = array<i64: 128, 128>}, {pipeline_mode = #tpu.pipeline_mode<synchronous>, transform_indices = @transform_4, window_bounds = array<i64: 1, 128>}, {pipeline_mode = #tpu.pipeline_mode<synchronous>, transform_indices = @transform_5, window_bounds = array<i64: 1, 128>}, {pipeline_mode = #tpu.pipeline_mode<synchronous>, transform_indices = @transform_6, window_bounds = array<i64: 1, 128>}, {transform_indices = @transform_7, window_bounds = array<i64: 16, 128>}]} {
    %c0 = arith.constant 0 : index
    %c0_0 = arith.constant 0 : index
    %0 = vector.load %arg1[%c0, %c0_0] : memref<16x128xf32, #tpu.memory_space<vmem>>, vector<16x128xf32>
    %1 = arith.truncf %0 : vector<16x128xf32> to vector<16x128xbf16>
    %c0_1 = arith.constant 0 : index
    %c0_2 = arith.constant 0 : index
    %2 = vector.load %arg2[%c0_1, %c0_2] : memref<128x128xbf16, #tpu.memory_space<vmem>>, vector<128x128xbf16>
    %cst = arith.constant dense<0.000000e+00> : vector<16x128xf32>
    %3 = tpu.matmul %1, %2, %cst {dimension_numbers = #tpu.dot_dimension_numbers<[1], [0], [0], [1], [0, 0, 1, 1], [], []>} : vector<16x128xbf16>, vector<128x128xbf16>, vector<16x128xf32> -> vector<16x128xf32>
    %c0_3 = arith.constant 0 : index
    %c0_4 = arith.constant 0 : index
    %4 = vector.load %arg3[%c0_3, %c0_4] : memref<1x128xf32, #tpu.memory_space<vmem>>, vector<1x128xf32>
    %5 = vector.broadcast %4 : vector<1x128xf32> to vector<16x128xf32>
    %6 = arith.addf %3, %5 : vector<16x128xf32>
    %cst_5 = arith.constant 0.000000e+00 : f32
    %7 = vector.broadcast %cst_5 : f32 to vector<16x128xf32>
    %8 = arith.maximumf %6, %7 : vector<16x128xf32>
    %9 = arith.truncf %8 : vector<16x128xf32> to vector<16x128xbf16>
    %c0_6 = arith.constant 0 : index
    %c0_7 = arith.constant 0 : index
    %10 = vector.load %arg4[%c0_6, %c0_7] : memref<128x128xbf16, #tpu.memory_space<vmem>>, vector<128x128xbf16>
    %cst_8 = arith.constant dense<0.000000e+00> : vector<16x128xf32>
    %11 = tpu.matmul %9, %10, %cst_8 {dimension_numbers = #tpu.dot_dimension_numbers<[1], [0], [0], [1], [0, 0, 1, 1], [], []>} : vector<16x128xbf16>, vector<128x128xbf16>, vector<16x128xf32> -> vector<16x128xf32>
    %c0_9 = arith.constant 0 : index
    %c0_10 = arith.constant 0 : index
    %12 = vector.load %arg5[%c0_9, %c0_10] : memref<1x128xf32, #tpu.memory_space<vmem>>, vector<1x128xf32>
    %13 = vector.broadcast %12 : vector<1x128xf32> to vector<16x128xf32>
    %14 = arith.addf %11, %13 : vector<16x128xf32>
    %15 = arith.addf %0, %14 : vector<16x128xf32>
    %cst_11 = arith.constant dense<0.000000e+00> : vector<16xf32>
    %16 = vector.multi_reduction <add>, %15, %cst_11 [1] : vector<16x128xf32> to vector<16xf32>
    %17 = vector.shape_cast %16 : vector<16xf32> to vector<16x1xf32>
    %cst_12 = arith.constant 3.125000e-02 : f32
    %18 = vector.broadcast %cst_12 : f32 to vector<16x1xf32>
    %19 = arith.mulf %17, %18 : vector<16x1xf32>
    %20 = vector.broadcast %19 : vector<16x1xf32> to vector<16x128xf32>
    %21 = arith.subf %15, %20 : vector<16x128xf32>
    %22 = tpu.iota {dimensions = array<i32: 1>} : vector<16x128xi32>
    %c32_i32 = arith.constant 32 : i32
    %23 = vector.broadcast %c32_i32 : i32 to vector<16x128xi32>
    %24 = arith.cmpi slt, %22, %23 : vector<16x128xi32>
    %cst_13 = arith.constant 0.000000e+00 : f32
    %25 = vector.broadcast %cst_13 : f32 to vector<16x128xf32>
    %26 = arith.select %24, %21, %25 : vector<16x128xi1>, vector<16x128xf32>
    %27 = arith.mulf %26, %26 : vector<16x128xf32>
    %cst_14 = arith.constant dense<0.000000e+00> : vector<16xf32>
    %28 = vector.multi_reduction <add>, %27, %cst_14 [1] : vector<16x128xf32> to vector<16xf32>
    %29 = vector.shape_cast %28 : vector<16xf32> to vector<16x1xf32>
    %cst_15 = arith.constant 3.125000e-02 : f32
    %30 = vector.broadcast %cst_15 : f32 to vector<16x1xf32>
    %31 = arith.mulf %29, %30 : vector<16x1xf32>
    %cst_16 = arith.constant 9.99999974E-6 : f32
    %32 = vector.broadcast %cst_16 : f32 to vector<16x1xf32>
    %33 = arith.addf %31, %32 : vector<16x1xf32>
    %34 = math.rsqrt %33 : vector<16x1xf32>
    %35 = vector.broadcast %34 : vector<16x1xf32> to vector<16x128xf32>
    %36 = arith.mulf %26, %35 : vector<16x128xf32>
    %c0_17 = arith.constant 0 : index
    %c0_18 = arith.constant 0 : index
    %37 = vector.load %arg6[%c0_17, %c0_18] : memref<1x128xf32, #tpu.memory_space<vmem>>, vector<1x128xf32>
    %38 = vector.broadcast %37 : vector<1x128xf32> to vector<16x128xf32>
    %39 = arith.mulf %36, %38 : vector<16x128xf32>
    %c0_19 = arith.constant 0 : index
    %c0_20 = arith.constant 0 : index
    %40 = vector.load %arg7[%c0_19, %c0_20] : memref<1x128xf32, #tpu.memory_space<vmem>>, vector<1x128xf32>
    %41 = vector.broadcast %40 : vector<1x128xf32> to vector<16x128xf32>
    %42 = arith.addf %39, %41 : vector<16x128xf32>
    %c0_21 = arith.constant 0 : index
    %c0_22 = arith.constant 0 : index
    %43 = vector.load %arg8[%c0_21, %c0_22] : memref<16x128xf32, #tpu.memory_space<vmem>>, vector<16x128xf32>
    tpu.vector_store %arg8[%c0_21, %c0_22], %42 {strides = array<i32>} : memref<16x128xf32, #tpu.memory_space<vmem>>, vector<16x128xf32>,
    return
  }
  func.func @transform_0(%arg0: i32) -> (i32, i32) {
    %c0_i32 = arith.constant 0 : i32
    %c0_i32_0 = arith.constant 0 : i32
    return %arg0, %c0_i32 : i32, i32
  }
  func.func @transform_1(%arg0: i32) -> (i32, i32) {
    %c0_i32 = arith.constant 0 : i32
    %c0_i32_0 = arith.constant 0 : i32
    %c0_i32_1 = arith.constant 0 : i32
    return %c0_i32, %c0_i32_0 : i32, i32
  }
  func.func @transform_2(%arg0: i32) -> (i32, i32) {
    %c0_i32 = arith.constant 0 : i32
    %c0_i32_0 = arith.constant 0 : i32
    %c0_i32_1 = arith.constant 0 : i32
    return %c0_i32, %c0_i32_0 : i32, i32
  }
  func.func @transform_3(%arg0: i32) -> (i32, i32) {
    %c0_i32 = arith.constant 0 : i32
    %c0_i32_0 = arith.constant 0 : i32
    %c0_i32_1 = arith.constant 0 : i32
    return %c0_i32, %c0_i32_0 : i32, i32
  }
  func.func @transform_4(%arg0: i32) -> (i32, i32) {
    %c0_i32 = arith.constant 0 : i32
    %c0_i32_0 = arith.constant 0 : i32
    %c0_i32_1 = arith.constant 0 : i32
    return %c0_i32, %c0_i32_0 : i32, i32
  }
  func.func @transform_5(%arg0: i32) -> (i32, i32) {
    %c0_i32 = arith.constant 0 : i32
    %c0_i32_0 = arith.constant 0 : i32
    %c0_i32_1 = arith.constant 0 : i32
    return %c0_i32, %c0_i32_0 : i32, i32
  }
  func.func @transform_6(%arg0: i32) -> (i32, i32) {
    %c0_i32 = arith.constant 0 : i32
    %c0_i32_0 = arith.constant 0 : i32
    %c0_i32_1 = arith.constant 0 : i32
    return %c0_i32, %c0_i32_0 : i32, i32
  }
  func.func @transform_7(%arg0: i32) -> (i32, i32) {
    %c0_i32 = arith.constant 0 : i32
    %c0_i32_0 = arith.constant 0 : i32
    return %arg0, %c0_i32 : i32, i32
  }
}

</mosaic_0001>

<llo_original>
// kernel: _ffn_layer_impl.1
$region0: #{_ffn_layer_impl.1}
  #allocation0 [shape = 'u32[]', space=smem, size = 0x4, offset = 0x4, fixed_abs, tag = 'smem constant byte address 0x4 - core index']
  #allocation1 [shape = 'u32[144,128]{1,0:T(1,128)}', space=vmem, size = 0x12000, scoped, tag = 'internal scratch']
  %s0 = inlined_call_operand.vmem [shape: f32[16,128], index: 0, kind: input, shape index: {}]
  %s1 = inlined_call_operand.vmem [shape: bf16[128,128], index: 1, kind: input, shape index: {}]
  %s2 = inlined_call_operand.vmem [shape: f32[1,128], index: 2, kind: input, shape index: {}]
  %s3 = inlined_call_operand.vmem [shape: bf16[128,128], index: 3, kind: input, shape index: {}]
  %s4 = inlined_call_operand.vmem [shape: f32[1,128], index: 4, kind: input, shape index: {}]
  %s5 = inlined_call_operand.vmem [shape: f32[1,128], index: 5, kind: input, shape index: {}]
  %s6 = inlined_call_operand.vmem [shape: f32[1,128], index: 6, kind: input, shape index: {}]
  %s7 = inlined_call_operand.hbm [shape: f32[16,128], index: 7, kind: output, shape index: {}]
  %s8 = sld [smem:[#allocation0]]
  $region38: #{_ffn_layer_impl.1} parent=0
    _
  %s10 = ssub.s32 1, %s8
  %s11 = scalar_select 0, %s10, %s8
  $region1: #{_ffn_layer_impl.1} parent=0
    #allocation2 [shape = 'u8[8192]{0}', space=vmem, size = 0x2000, scoped, tag = 'output window, operand 0, single buffered']
    #allocation3 [shape = 's32[1]{0}', space=sflag, size = 0x4, scoped, tag = 'scoped memory for _ffn_layer_impl.1']
    %12 = vsyncpa [#allocation3], 0
    // Predicated region
    $region2: #{_ffn_layer_impl.1} parent=1 // pred_check
      _
    $region3: #{_ffn_layer_impl.1} parent=1 // pred_check_branch
      %14 = sbr.rel (0) target = $region5
    $region4: #{_ffn_layer_impl.1} parent=1 // pred_region
      _
    $region5: #{_ffn_layer_impl.1} parent=1 // pred_fallthru
      _
    // Predicated region
    $region6: #{_ffn_layer_impl.1} parent=1 // pred_check
      _
    $region7: #{_ffn_layer_impl.1} parent=1 // pred_check_branch
      %16 = sbr.rel (0) target = $region9
    $region8: #{_ffn_layer_impl.1} parent=1 // pred_region
      _
    $region9: #{_ffn_layer_impl.1} parent=1 // pred_fallthru
      _
    // Predicated region
    $region10: #{_ffn_layer_impl.1} parent=1 // pred_check
      _
    $region11: #{_ffn_layer_impl.1} parent=1 // pred_check_branch
      %18 = sbr.rel (0) target = $region13
    $region12: #{_ffn_layer_impl.1} parent=1 // pred_region
      _
    $region13: #{_ffn_layer_impl.1} parent=1 // pred_fallthru
      _
    // Predicated region
    $region14: #{_ffn_layer_impl.1} parent=1 // pred_check
      _
    $region15: #{_ffn_layer_impl.1} parent=1 // pred_check_branch
      %20 = sbr.rel (0) target = $region17
    $region16: #{_ffn_layer_impl.1} parent=1 // pred_region
      _
    $region17: #{_ffn_layer_impl.1} parent=1 // pred_fallthru
      _
    // Predicated region
    $region18: #{_ffn_layer_impl.1} parent=1 // pred_check
      _
    $region19: #{_ffn_layer_impl.1} parent=1 // pred_check_branch
      %22 = sbr.rel (0) target = $region21
    $region20: #{_ffn_layer_impl.1} parent=1 // pred_region
      _
    $region21: #{_ffn_layer_impl.1} parent=1 // pred_fallthru
      _
    // Predicated region
    $region22: #{_ffn_layer_impl.1} parent=1 // pred_check
      _
    $region23: #{_ffn_layer_impl.1} parent=1 // pred_check_branch
      %24 = sbr.rel (0) target = $region25
    $region24: #{_ffn_layer_impl.1} parent=1 // pred_region
      _
    $region25: #{_ffn_layer_impl.1} parent=1 // pred_fallthru
      _
    // Predicated region
    $region26: #{_ffn_layer_impl.1} parent=1 // pred_check
      _
    $region27: #{_ffn_layer_impl.1} parent=1 // pred_check_branch
      %26 = sbr.rel (0) target = $region29
    $region28: #{_ffn_layer_impl.1} parent=1 // pred_region
      _
    $region29: #{_ffn_layer_impl.1} parent=1 // pred_fallthru
      _
    %v28 = vld [vmem:[%s0] sm:$0xff]
    %v29 = vld [vmem:[%s0 + $0x8] sm:$0xff]
    %v30 = vpack.c.bf16 %v29, %v28
    %v31 = vld [vmem:[%s1] sm:$0xf]
    %v32 = vld [vmem:[%s1 + $0x4] sm:$0xf]
    %v33 = vld [vmem:[%s1 + $0x8] sm:$0xf]
    %v34 = vld [vmem:[%s1 + $0xc] sm:$0xf]
    %v35 = vld [vmem:[%s1 + $0x10] sm:$0xf]
    %v36 = vld [vmem:[%s1 + $0x14] sm:$0xf]
    %v37 = vld [vmem:[%s1 + $0x18] sm:$0xf]
    %v38 = vld [vmem:[%s1 + $0x1c] sm:$0xf]
    %v39 = vld [vmem:[%s1 + $0x20] sm:$0xf]
    %v40 = vld [vmem:[%s1 + $0x24] sm:$0xf]
    %v41 = vld [vmem:[%s1 + $0x28] sm:$0xf]
    %v42 = vld [vmem:[%s1 + $0x2c] sm:$0xf]
    %v43 = vld [vmem:[%s1 + $0x30] sm:$0xf]
    %v44 = vld [vmem:[%s1 + $0x34] sm:$0xf]
    %v45 = vld [vmem:[%s1 + $0x38] sm:$0xf]
    %v46 = vld [vmem:[%s1 + $0x3c] sm:$0xf]
    %v47 = vld [vmem:[%s2] sm:$0x1]
    %v49 = vlaneseq
    %v50 = vshrl.u32 %v49, 7
    %v51 = vsub.s32 0, %v50
    %v52 = vrot.slane %v47, %v51
    %v70 = vunpack.c.l.b16 %v31
    %v71 = vunpack.c.l.b16 %v32
    %v72 = vunpack.c.l.b16 %v33
    %v73 = vunpack.c.l.b16 %v34
    %v74 = vunpack.c.l.b16 %v35
    %v75 = vunpack.c.l.b16 %v36
    %v76 = vunpack.c.l.b16 %v37
    %v77 = vunpack.c.l.b16 %v38
    %v78 = vunpack.c.l.b16 %v39
    %v79 = vunpack.c.l.b16 %v40
    %v80 = vunpack.c.l.b16 %v41
    %v81 = vunpack.c.l.b16 %v42
    %v82 = vunpack.c.l.b16 %v43
    %v83 = vunpack.c.l.b16 %v44
    %v84 = vunpack.c.l.b16 %v45
    %v85 = vunpack.c.l.b16 %v46
    %v86 = vpack.c.b16 %v71, %v70
    %v87 = vpack.c.b16 %v73, %v72
    %v88 = vpack.c.b16 %v75, %v74
    %v89 = vpack.c.b16 %v77, %v76
    %v90 = vpack.c.b16 %v79, %v78
    %v91 = vpack.c.b16 %v81, %v80
    %v92 = vpack.c.b16 %v83, %v82
    %v93 = vpack.c.b16 %v85, %v84
    %102 = vmatprep.subr.bf16.mxu0 0
    %103 = vmatpush1.bf16.msra.mxu0 %v86
    %104 = vmatprep.subr.bf16.mxu0 0
    %105 = vmatpush1.bf16.msra.mxu0 %v87
    %106 = vmatprep.subr.bf16.mxu0 0
    %107 = vmatpush1.bf16.msra.mxu0 %v88
    %108 = vmatprep.subr.bf16.mxu0 0
    %109 = vmatpush1.bf16.msra.mxu0 %v89
    %110 = vmatprep.subr.bf16.mxu0 0
    %111 = vmatpush1.bf16.msra.mxu0 %v90
    %112 = vmatprep.subr.bf16.mxu0 0
    %113 = vmatpush1.bf16.msra.mxu0 %v91
    %114 = vmatprep.subr.bf16.mxu0 0
    %115 = vmatpush1.bf16.msra.mxu0 %v92
    %116 = vmatprep.subr.bf16.mxu0 0
    %117 = vmatpush1.bf16.msra.mxu0 %v93
    %118 = vmatprep.subr.bf16.mxu0 0
    %119 = vmatpush1.bf16.msra.mxu0 0
    %120 = vmatprep.subr.bf16.mxu0 0
    %121 = vmatpush1.bf16.msra.mxu0 0
    %122 = vmatprep.subr.bf16.mxu0 0
    %123 = vmatpush1.bf16.msra.mxu0 0
    %124 = vmatprep.subr.bf16.mxu0 0
    %125 = vmatpush1.bf16.msra.mxu0 0
    %126 = vmatprep.subr.bf16.mxu0 0
    %127 = vmatpush1.bf16.msra.mxu0 0
    %128 = vmatprep.subr.bf16.mxu0 0
    %129 = vmatpush1.bf16.msra.mxu0 0
    %130 = vmatprep.subr.bf16.mxu0 0
    %131 = vmatpush1.bf16.msra.mxu0 0
    %132 = vmatprep.subr.bf16.mxu0 0
    %133 = vmatpush1.bf16.msra.mxu0 0
    %134 = vmatprep.mubr.bf16.mxu0 0
    %135 = vmatmul.mubr.bf16.gmra.mrb[0].mxu0 %v30
    %v136 = vpop.f32.mrb[0].mxu0
    %v137 = vadd.f32 %v52, %v136
    %v138 = vpop.f32.mrb[0].mxu0
    %v139 = vpop.f32.mrb[0].mxu0
    %v140 = vadd.f32 %v52, %v139
    %v141 = vpop.f32.mrb[0].mxu0
    %142 = vdwg.mxu0
    %v143 = vmax.f32 %v137, 0.0
    %v144 = vmax.f32 %v140, 0.0
    %v145 = vpack.c.bf16 %v144, %v143
    %v146 = vld [vmem:[%s3] sm:$0xf]
    %v147 = vld [vmem:[%s3 + $0x4] sm:$0xf]
    %v148 = vld [vmem:[%s3 + $0x8] sm:$0xf]
    %v149 = vld [vmem:[%s3 + $0xc] sm:$0xf]
    %v150 = vld [vmem:[%s3 + $0x10] sm:$0xf]
    %v151 = vld [vmem:[%s3 + $0x14] sm:$0xf]
    %v152 = vld [vmem:[%s3 + $0x18] sm:$0xf]
    %v153 = vld [vmem:[%s3 + $0x1c] sm:$0xf]
    %v154 = vld [vmem:[%s3 + $0x20] sm:$0xf]
    %v155 = vld [vmem:[%s3 + $0x24] sm:$0xf]
    %v156 = vld [vmem:[%s3 + $0x28] sm:$0xf]
    %v157 = vld [vmem:[%s3 + $0x2c] sm:$0xf]
    %v158 = vld [vmem:[%s3 + $0x30] sm:$0xf]
    %v159 = vld [vmem:[%s3 + $0x34] sm:$0xf]
    %v160 = vld [vmem:[%s3 + $0x38] sm:$0xf]
    %v161 = vld [vmem:[%s3 + $0x3c] sm:$0xf]
    %v162 = vld [vmem:[%s4] sm:$0x1]
    %v164 = vlaneseq
    %v165 = vshrl.u32 %v164, 7
    %v166 = vsub.s32 0, %v165
    %v167 = vrot.slane %v162, %v166
    %v185 = vunpack.c.l.b16 %v146
    %v186 = vunpack.c.l.b16 %v147
    %v187 = vunpack.c.l.b16 %v148
    %v188 = vunpack.c.l.b16 %v149
    %v189 = vunpack.c.l.b16 %v150
    %v190 = vunpack.c.l.b16 %v151
    %v191 = vunpack.c.l.b16 %v152
    %v192 = vunpack.c.l.b16 %v153
    %v193 = vunpack.c.l.b16 %v154
    %v194 = vunpack.c.l.b16 %v155
    %v195 = vunpack.c.l.b16 %v156
    %v196 = vunpack.c.l.b16 %v157
    %v197 = vunpack.c.l.b16 %v158
    %v198 = vunpack.c.l.b16 %v159
    %v199 = vunpack.c.l.b16 %v160
    %v200 = vunpack.c.l.b16 %v161
    %v201 = vpack.c.b16 %v186, %v185
    %v202 = vpack.c.b16 %v188, %v187
    %v203 = vpack.c.b16 %v190, %v189
    %v204 = vpack.c.b16 %v192, %v191
    %v205 = vpack.c.b16 %v194, %v193
    %v206 = vpack.c.b16 %v196, %v195
    %v207 = vpack.c.b16 %v198, %v197
    %v208 = vpack.c.b16 %v200, %v199
    %217 = vmatprep.subr.bf16.mxu0 0
    %218 = vmatpush1.bf16.msra.mxu0 %v201
    %219 = vmatprep.subr.bf16.mxu0 0
    %220 = vmatpush1.bf16.msra.mxu0 %v202
    %221 = vmatprep.subr.bf16.mxu0 0
    %222 = vmatpush1.bf16.msra.mxu0 %v203
    %223 = vmatprep.subr.bf16.mxu0 0
    %224 = vmatpush1.bf16.msra.mxu0 %v204
    %225 = vmatprep.subr.bf16.mxu0 0
    %226 = vmatpush1.bf16.msra.mxu0 %v205
    %227 = vmatprep.subr.bf16.mxu0 0
    %228 = vmatpush1.bf16.msra.mxu0 %v206
    %229 = vmatprep.subr.bf16.mxu0 0
    %230 = vmatpush1.bf16.msra.mxu0 %v207
    %231 = vmatprep.subr.bf16.mxu0 0
    %232 = vmatpush1.bf16.msra.mxu0 %v208
    %233 = vmatprep.subr.bf16.mxu0 0
    %234 = vmatpush1.bf16.msra.mxu0 0
    %235 = vmatprep.subr.bf16.mxu0 0
    %236 = vmatpush1.bf16.msra.mxu0 0
    %237 = vmatprep.subr.bf16.mxu0 0
    %238 = vmatpush1.bf16.msra.mxu0 0
    %239 = vmatprep.subr.bf16.mxu0 0
    %240 = vmatpush1.bf16.msra.mxu0 0
    %241 = vmatprep.subr.bf16.mxu0 0
    %242 = vmatpush1.bf16.msra.mxu0 0
    %243 = vmatprep.subr.bf16.mxu0 0
    %244 = vmatpush1.bf16.msra.mxu0 0
    %245 = vmatprep.subr.bf16.mxu0 0
    %246 = vmatpush1.bf16.msra.mxu0 0
    %247 = vmatprep.subr.bf16.mxu0 0
    %248 = vmatpush1.bf16.msra.mxu0 0
    %249 = vmatprep.mubr.bf16.mxu0 0
    %250 = vmatmul.mubr.bf16.gmra.mrb[0].mxu0 %v145
    %v251 = vpop.f32.mrb[0].mxu0
    %v252 = vadd.f32 %v167, %v251
    %v253 = vpop.f32.mrb[0].mxu0
    %v254 = vpop.f32.mrb[0].mxu0
    %v255 = vadd.f32 %v167, %v254
    %v256 = vpop.f32.mrb[0].mxu0
    %257 = vdwg.mxu0
    %v258 = vadd.f32 %v28, %v252
    %v259 = vadd.f32 %v29, %v255
    %260 = vadd.xlane.f32.xlu0 %v258
    %v261 = vpop.xlane.xlu0 %260
    %262 = vadd.xlane.f32.xlu0 %v259
    %v263 = vpop.xlane.xlu0 %262
    %v264 = vmul.f32 %v261, 0.03125
    %v265 = vmul.f32 %v263, 0.03125
    %v266 = vsub.f32 %v258, %v264
    %v267 = vsub.f32 %v259, %v265
    %v268 = vlaneseq
    %v269 = vand.u32 %v268, 127
    %vm270 = vcmp.lt.s32.totalorder %v269, 32
    %v271 = vsel %vm270, %v266, 0.0
    %v272 = vsel %vm270, %v267, 0.0
    %v273 = vmul.f32 %v271, %v271
    %v274 = vmul.f32 %v272, %v272
    %275 = vadd.xlane.f32.xlu0 %v273
    %v276 = vpop.xlane.xlu0 %275
    %277 = vadd.xlane.f32.xlu0 %v274
    %v278 = vpop.xlane.xlu0 %277
    %v279 = vmul.f32 %v276, 0.03125
    %v280 = vmul.f32 %v278, 0.03125
    %v281 = vadd.f32 %v279, 1e-05
    %v282 = vadd.f32 %v280, 1e-05
    %v283 = vrsqrt.pop %v281
    %v284 = vrsqrt.pop %v282
    %v285 = vmul.f32 %v271, %v283
    %v286 = vmul.f32 %v272, %v284
    %v287 = vld [vmem:[%s5] sm:$0x1]
    %v289 = vlaneseq
    %v290 = vshrl.u32 %v289, 7
    %v291 = vsub.s32 0, %v290
    %v292 = vrot.slane %v287, %v291
    %v294 = vmul.f32 %v285, %v292
    %v295 = vmul.f32 %v286, %v292
    %v296 = vld [vmem:[%s6] sm:$0x1]
    %v298 = vlaneseq
    %v299 = vshrl.u32 %v298, 7
    %v300 = vsub.s32 0, %v299
    %v301 = vrot.slane %v296, %v300
    %v303 = vadd.f32 %v294, %v301
    %v304 = vadd.f32 %v295, %v301
    %305 = vst [vmem:[#allocation2] sm:$0xff] %v303
    %306 = vst [vmem:[#allocation2 + $0x8] sm:$0xff] %v304
    // Predicated region
    $region30: #{_ffn_layer_impl.1} parent=1 // pred_check
      _
    $region31: #{_ffn_layer_impl.1} parent=1 // pred_check_branch
      %308 = sbr.rel (0) target = $region33
    $region32: #{_ffn_layer_impl.1} parent=1 // pred_region
      %s310 = ssub.s32 256, 256
      %311 = vsyncadd [#allocation3], %s310
      %s312 = sshll.u32 [#allocation2], 4
      %s313 = int_to_ptr.vmem [resolvable:$true] %s312
      %318 = dma.vmem_to_hbm [thread:$0]  %s313, 256, %s7, [#allocation3], 128, 128, 8
    $region33: #{_ffn_layer_impl.1} parent=1 // pred_fallthru
      _
    // Predicated region
    $region34: #{_ffn_layer_impl.1} parent=1 // pred_check
      _
    $region35: #{_ffn_layer_impl.1} parent=1 // pred_check_branch
      %320 = sbr.rel (0) target = $region37
    $region36: #{_ffn_layer_impl.1} parent=1 // pred_region
      %321 = dma.done [#allocation3], 256
    $region37: #{_ffn_layer_impl.1} parent=1 // pred_fallthru
      _
    %322 = vsyncpa [#allocation3], 1

</llo_original>
